<compile_context>
chip_gen: v5e
topology: v5e:2x2
jax: 0.10.0
libtpu: 0.0.40
codegen_flags: <defaults>
</compile_context>

<pallas_src>
import functools

import jax
import jax.numpy as jnp
from jax.experimental import pallas as pl
from jax.experimental.pallas import tpu as pltpu


def _round_up(v, m):
    return ((v + m - 1) // m) * m


_VMEM_LIMIT_BYTES = 48 * 1024 * 1024   # explicit; < physical on v5e/v6e/v7x
_VMEM_TILE_BUDGET = 8 * 1024 * 1024    # per-grid-step working-set target
_BLOCKDIAG_W_CAP = 4 * 1024 * 1024     # max block-diagonal weight bytes (path A)


# ---------------------------------------------------------------------------
# Path A kernel: block-diagonal-over-nodes fused gate weight.
#   body_ref : (tile_t, N*Cin)       rows [t*tile_t, (t+1)*tile_t) of x
#   halo_ref : (halo_rows, N*Cin)    rows [(t+1)*tile_t, (t+1)*tile_t+halo)
#   w_ref    : (K, N*Cin, 3*N*Cout)  per-tap block-diag weights, cols [P|Q|R]
#   b_ref    : (1, 3*N*Cout)
#   o_ref    : (tile_t, N*Cout)      lane-dense output rows
# ---------------------------------------------------------------------------
def _tconv_blockdiag_kernel(body_ref, halo_ref, w_ref, b_ref, o_ref, *,
                            kernel_size, tile_t, n_cout):
    K = kernel_size
    # Sublane-aligned concat (tile_t % 8 == 0): cheap window assembly, no
    # lane-dim relayout.  Stays in the matmul dtype (no f32 round trip).
    xw = jnp.concatenate([body_ref[...], halo_ref[...]], axis=0)

    # K accumulated MXU matmuls on sublane-shifted slices (f32 accumulation).
    acc = jnp.dot(xw[0:tile_t, :], w_ref[0],
                  preferred_element_type=jnp.float32)
    for k in range(1, K):
        acc = acc + jnp.dot(xw[k:k + tile_t, :], w_ref[k],
                            preferred_element_type=jnp.float32)
    acc = acc + b_ref[...].astype(jnp.float32)       # (tile_t, 3*N*Cout) f32

    # Gated epilogue in f32; gate slices sit on 128-lane boundaries.
    p = acc[:, :n_cout]
    q = jax.nn.sigmoid(acc[:, n_cout:2 * n_cout])
    r = acc[:, 2 * n_cout:]
    o_ref[...] = jnp.maximum(p * q + r, 0.0).astype(o_ref.dtype)


# ---------------------------------------------------------------------------
# Path B kernel (fallback for large N*Cin): im2col done in the wrapper,
# kernel body is a single matmul + gated epilogue, no relayout at all.
#   x_ref : (rows, K*Cin)   rows ordered (time, node)
#   w_ref : (K*Cin, 3*Cout) fused gate weights [P | Q | R]
#   b_ref : (1, 3*Cout)
#   o_ref : (rows, Cout)
# ---------------------------------------------------------------------------
def _tconv_im2col_kernel(x_ref, w_ref, b_ref, o_ref, *, cout):
    acc = jnp.dot(x_ref[...], w_ref[...], preferred_element_type=jnp.float32)
    acc = acc + b_ref[...].astype(jnp.float32)        # (rows, 3*Cout)
    p = acc[:, :cout]
    q = jax.nn.sigmoid(acc[:, cout:2 * cout])
    r = acc[:, 2 * cout:]
    o_ref[...] = jnp.maximum(p * q + r, 0.0).astype(o_ref.dtype)


def temporal_conv(x, w1, w2, w3, b1, b2, b3, *, tile_t=None,
                  use_bf16_matmul=None, node_fused=None):
    """STGCN TemporalConv forward.

    x : (B, T, N, Cin);  w*: (K, Cin, Cout) with w[k,c,o] = Conv2d.weight[o,c,0,k];
    b*: (Cout,).  Returns relu(P * sigmoid(Q) + R) of shape (B, T-K+1, N, Cout).
    """
    B, T, N, Cin = x.shape
    K, _, Cout = w1.shape
    T_out = T - K + 1
    assert T_out >= 1, "kernel_size larger than input_time_steps"
    out_dtype = x.dtype

    if use_bf16_matmul is None:               # dtype-preserving by default
        use_bf16_matmul = (x.dtype == jnp.bfloat16)
    mm_dtype = jnp.bfloat16 if use_bf16_matmul else x.dtype
    esize = jnp.dtype(mm_dtype).itemsize
    osize = jnp.dtype(out_dtype).itemsize

    n_cin, n_cout = N * Cin, N * Cout
    bd_w_bytes = K * n_cin * 3 * n_cout * esize
    if node_fused is None:
        node_fused = (n_cin <= 128) and (bd_w_bytes <= _BLOCKDIAG_W_CAP)

    halo_rows = _round_up(max(K - 1, 1), 8)   # sublane-aligned time halo

    if node_fused:
        # ------------------- Path A: block-diagonal over nodes -------------
        # Per-output-row working set (lane/sublane padded, double-buffered).
        per_row = (2 * _round_up(n_cin, 128) * esize
                   + 2 * _round_up(n_cout, 128) * osize
                   + 3 * _round_up(3 * n_cout, 128) * 4)
        cap = max(halo_rows,
                  (_VMEM_TILE_BUDGET // max(per_row, 1))
                  // halo_rows * halo_rows)
        cap = min(cap, 4096)
        full_tile = _round_up(T_out, halo_rows)
        if tile_t is None:
            tt = min(full_tile, cap)
            nt = -(-T_out // tt)
            # v7x has 2 TensorCores: guarantee >= 2 parallel grid steps.
            if B == 1 and nt == 1 and tt >= 2 * halo_rows:
                tt = _round_up(-(-T_out // 2), halo_rows)
                nt = -(-T_out // tt)
        else:
            tt = max(halo_rows, min(_round_up(tile_t, halo_rows),
                                    cap, full_tile))
            nt = -(-T_out // tt)
        halo_stride = tt // halo_rows          # exact: tt % halo_rows == 0

        T_out_pad = nt * tt
        T_pad = T_out_pad + halo_rows

        x2 = x.reshape(B, T, n_cin)
        if T_pad > T:
            x2 = jnp.pad(x2, ((0, 0), (0, T_pad - T), (0, 0)))
        x2 = x2.astype(mm_dtype)

        # Block-diagonal-over-nodes fused gate weight, columns = [P | Q | R].
        eye_n = jnp.eye(N, dtype=jnp.float32)

        def block_diag(w):                     # (K,Cin,Cout) -> (K,N*Cin,N*Cout)
            wb = jnp.einsum('nm,kco->kncmo', eye_n, w.astype(jnp.float32))
            return wb.reshape(K, n_cin, n_cout)

        w_full = jnp.concatenate(
            [block_diag(w1), block_diag(w2), block_diag(w3)],
            axis=2).astype(mm_dtype)                       # (K, NCin, 3*NCout)
        b_full = jnp.concatenate(
            [jnp.tile(b1, N), jnp.tile(b2, N), jnp.tile(b3, N)]
        ).astype(jnp.float32).reshape(1, 3 * n_cout)

        kernel = functools.partial(_tconv_blockdiag_kernel, kernel_size=K,
                                   tile_t=tt, n_cout=n_cout)
        out = pl.pallas_call(
            kernel,
            out_shape=jax.ShapeDtypeStruct((B, T_out_pad, n_cout), out_dtype),
            grid_spec=pltpu.PrefetchScalarGridSpec(
                num_scalar_prefetch=0,
                grid=(B, nt),
                in_specs=[
                    # non-overlapping body rows of x
                    pl.BlockSpec((None, tt, n_cin), lambda b, t: (b, t, 0)),
                    # small sublane-aligned halo (same HBM array, 2nd view)
                    pl.BlockSpec((None, halo_rows, n_cin),
                                 lambda b, t: (b, (t + 1) * halo_stride, 0)),
                    # fused weights / bias: constant index map -> fetched once
                    pl.BlockSpec((K, n_cin, 3 * n_cout),
                                 lambda b, t: (0, 0, 0)),
                    pl.BlockSpec((1, 3 * n_cout), lambda b, t: (0, 0)),
                ],
                out_specs=pl.BlockSpec((None, tt, n_cout),
                                       lambda b, t: (b, t, 0)),
            ),
            compiler_params=pltpu.CompilerParams(
                dimension_semantics=("parallel", "parallel"),
                vmem_limit_bytes=_VMEM_LIMIT_BYTES),
        )(x2, x2, w_full, b_full)

        return out[:, :T_out, :].reshape(B, T_out, N, Cout)

    # ----------------- Path B: wrapper-side im2col (large N*Cin) -----------
    per_row = (2 * _round_up(K * Cin, 128) * esize
               + 2 * _round_up(Cout, 128) * osize
               + 3 * _round_up(3 * Cout, 128) * 4)
    rows_cap = max(8 * N, _VMEM_TILE_BUDGET // max(per_row, 1))
    tt_cap = max(8, min(rows_cap, 4096) // N // 8 * 8)
    full_tile = _round_up(T_out, 8)
    if tile_t is None:
        tt = min(full_tile, tt_cap)
    else:
        tt = max(8, min(_round_up(tile_t, 8), tt_cap, full_tile))
    nt = -(-T_out // tt)
    T_out_pad = nt * tt
    T_need = T_out_pad + K - 1

    xp = x
    if T_need > T:
        xp = jnp.pad(xp, ((0, 0), (0, T_need - T), (0, 0), (0, 0)))
    # im2col slab: rows = (time, node), lanes = (tap, cin).
    slab = jnp.stack([xp[:, k:k + T_out_pad] for k in range(K)], axis=3)
    slab = slab.reshape(B, T_out_pad * N, K * Cin).astype(mm_dtype)

    w_cat = jnp.concatenate([w1.reshape(K * Cin, Cout),
                             w2.reshape(K * Cin, Cout),
                             w3.reshape(K * Cin, Cout)], axis=1).astype(mm_dtype)
    b_cat = jnp.concatenate([b1, b2, b3]).astype(jnp.float32).reshape(1, 3 * Cout)

    rows = tt * N
    kernel = functools.partial(_tconv_im2col_kernel, cout=Cout)
    out = pl.pallas_call(
        kernel,
        out_shape=jax.ShapeDtypeStruct((B, T_out_pad * N, Cout), out_dtype),
        grid_spec=pltpu.PrefetchScalarGridSpec(
            num_scalar_prefetch=0,
            grid=(B, nt),
            in_specs=[
                pl.BlockSpec((None, rows, K * Cin), lambda b, t: (b, t, 0)),
                pl.BlockSpec((K * Cin, 3 * Cout), lambda b, t: (0, 0)),
                pl.BlockSpec((1, 3 * Cout), lambda b, t: (0, 0)),
            ],
            out_specs=pl.BlockSpec((None, rows, Cout), lambda b, t: (b, t, 0)),
        ),
        compiler_params=pltpu.CompilerParams(
            dimension_semantics=("parallel", "parallel"),
            vmem_limit_bytes=_VMEM_LIMIT_BYTES),
    )(slab, w_cat, b_cat)

    return out[:, :T_out * N, :].reshape(B, T_out, N, Cout)


def temporal_conv_ref(x, W1, W2, W3, b1, b2, b3):
    """Pure-JAX reference mirroring the PyTorch forward exactly (NCHW conv)."""
    Xn = jnp.transpose(x, (0, 3, 2, 1))  # (B, Cin, N, T)
    dn = jax.lax.conv_dimension_numbers(Xn.shape, W1.shape,
                                        ('NCHW', 'OIHW', 'NCHW'))

    def conv(W, b):
        y = jax.lax.conv_general_dilated(Xn, W, (1, 1), 'VALID',
                                         dimension_numbers=dn)
        return y + b[None, :, None, None]

    P = conv(W1, b1)
    Q = jax.nn.sigmoid(conv(W2, b2))
    H = jax.nn.relu(P * Q + conv(W3, b3))
    return jnp.transpose(H, (0, 3, 2, 1))  # (B, T_out, N, Cout)


if __name__ == "__main__":
    B, T, N, Cin, Cout, K = 2, 8, 16, 4, 8, 3

    key = jax.random.PRNGKey(0)
    kx, kx2, k1, k2, k3, kb1, kb2, kb3 = jax.random.split(key, 8)

    x = jax.random.normal(kx, (B, T, N, Cin), dtype=jnp.float32)

    # Deterministic synthetic parameters (PyTorch Conv2d weight layout OIHW).
    scale = 1.0 / (Cin * K) ** 0.5
    W1 = jax.random.uniform(k1, (Cout, Cin, 1, K), jnp.float32, -scale, scale)
    W2 = jax.random.uniform(k2, (Cout, Cin, 1, K), jnp.float32, -scale, scale)
    W3 = jax.random.uniform(k3, (Cout, Cin, 1, K), jnp.float32, -scale, scale)
    b1 = jax.random.uniform(kb1, (Cout,), jnp.float32, -scale, scale)
    b2 = jax.random.uniform(kb2, (Cout,), jnp.float32, -scale, scale)
    b3 = jax.random.uniform(kb3, (Cout,), jnp.float32, -scale, scale)

    # Kernel weight layout: (K, Cin, Cout) so each tap is a plain matmul.
    to_k = lambda W: jnp.transpose(W[:, :, 0, :], (2, 1, 0))
    w1, w2, w3 = to_k(W1), to_k(W2), to_k(W3)

    ref = jax.block_until_ready(temporal_conv_ref(x, W1, W2, W3, b1, b2, b3))

    # 1) Default: block-diagonal node-fused path, lane-dense gates/output.
    out = jax.block_until_ready(temporal_conv(x, w1, w2, w3, b1, b2, b3))
    assert out.shape == (B, T - K + 1, N, Cout), out.shape
    assert jnp.allclose(out, ref, atol=1e-4, rtol=1e-4), \
        float(jnp.max(jnp.abs(out - ref)))

    # 2) Multi-tile path: non-overlapping body blocks + 8-row halo blocks.
    x_big = jax.random.normal(kx2, (1, 21, N, Cin), dtype=jnp.float32)
    ref2 = jax.block_until_ready(temporal_conv_ref(x_big, W1, W2, W3, b1, b2, b3))
    out2 = jax.block_until_ready(
        temporal_conv(x_big, w1, w2, w3, b1, b2, b3, tile_t=8))
    assert out2.shape == (1, 21 - K + 1, N, Cout), out2.shape
    assert jnp.allclose(out2, ref2, atol=1e-4, rtol=1e-4), \
        float(jnp.max(jnp.abs(out2 - ref2)))

    # 3) Wrapper-im2col fallback path (what large-N*Cin configurations use).
    out3 = jax.block_until_ready(
        temporal_conv(x, w1, w2, w3, b1, b2, b3, node_fused=False))
    assert jnp.allclose(out3, ref, atol=1e-4, rtol=1e-4), \
        float(jnp.max(jnp.abs(out3 - ref)))

    # 4) bf16-matmul path (f32 accumulation / f32 epilogue), looser tolerance.
    out4 = jax.block_until_ready(
        temporal_conv(x, w1, w2, w3, b1, b2, b3, use_bf16_matmul=True))
    assert jnp.allclose(out4, ref, atol=5e-2, rtol=5e-2), \
        float(jnp.max(jnp.abs(out4 - ref)))

    print("KERNEL_OK")
</pallas_src>

<mosaic_0001>
module attributes {stable_mosaic.version = 11 : i64} {
  func.func @_tconv_blockdiag_kernel(%arg0: i32, %arg1: i32, %arg2: memref<1x8x64xf32, #tpu.memory_space<vmem>>, %arg3: memref<1x8x64xf32, #tpu.memory_space<vmem>>, %arg4: memref<3x64x384xf32, #tpu.memory_space<vmem>>, %arg5: memref<1x384xf32, #tpu.memory_space<vmem>>, %arg6: memref<1x8x128xf32, #tpu.memory_space<vmem>>) attributes {dimension_semantics = [#tpu.dimension_semantics<parallel>, #tpu.dimension_semantics<parallel>], iteration_bounds = array<i64: 2, 1>, scalar_prefetch = 0 : i64, scratch_operands = 0 : i64, tpu.core_type = #tpu.core_type<tc>, window_params = [{transform_indices = @transform_0, window_bounds = array<i64: 1, 8, 64>}, {transform_indices = @transform_1, window_bounds = array<i64: 1, 8, 64>}, {pipeline_mode = #tpu.pipeline_mode<synchronous>, transform_indices = @transform_2, window_bounds = array<i64: 3, 64, 384>}, {pipeline_mode = #tpu.pipeline_mode<synchronous>, transform_indices = @transform_3, window_bounds = array<i64: 1, 384>}, {transform_indices = @transform_4, window_bounds = array<i64: 1, 8, 128>}]} {
    %c0 = arith.constant 0 : index
    %c0_0 = arith.constant 0 : index
    %c0_1 = arith.constant 0 : index
    %0 = vector.load %arg2[%c0, %c0_0, %c0_1] : memref<1x8x64xf32, #tpu.memory_space<vmem>>, vector<1x8x64xf32>
    %1 = vector.shape_cast %0 : vector<1x8x64xf32> to vector<8x64xf32>
    %c0_2 = arith.constant 0 : index
    %c0_3 = arith.constant 0 : index
    %c0_4 = arith.constant 0 : index
    %2 = vector.load %arg3[%c0_2, %c0_3, %c0_4] : memref<1x8x64xf32, #tpu.memory_space<vmem>>, vector<1x8x64xf32>
    %3 = vector.shape_cast %2 : vector<1x8x64xf32> to vector<8x64xf32>
    %4 = tpu.concatenate %1, %3 in 0 : vector<8x64xf32>, vector<8x64xf32> -> vector<16x64xf32>
    %5 = vector.extract_strided_slice %4 {offsets = [0, 0], sizes = [8, 64], strides = [1, 1]} : vector<16x64xf32> to vector<8x64xf32>
    %c0_5 = arith.constant 0 : index
    %c0_6 = arith.constant 0 : index
    %c0_7 = arith.constant 0 : index
    %6 = vector.load %arg4[%c0_5, %c0_6, %c0_7] : memref<3x64x384xf32, #tpu.memory_space<vmem>>, vector<1x64x384xf32>
    %7 = vector.shape_cast %6 : vector<1x64x384xf32> to vector<64x384xf32>
    %cst = arith.constant dense<0.000000e+00> : vector<8x384xf32>
    %8 = tpu.matmul %5, %7, %cst {dimension_numbers = #tpu.dot_dimension_numbers<[1], [0], [0], [1], [0, 0, 1, 1], [], []>} : vector<8x64xf32>, vector<64x384xf32>, vector<8x384xf32> -> vector<8x384xf32>
    %9 = vector.extract_strided_slice %4 {offsets = [1, 0], sizes = [8, 64], strides = [1, 1]} : vector<16x64xf32> to vector<8x64xf32>
    %c1 = arith.constant 1 : index
    %c0_8 = arith.constant 0 : index
    %c0_9 = arith.constant 0 : index
    %10 = vector.load %arg4[%c1, %c0_8, %c0_9] : memref<3x64x384xf32, #tpu.memory_space<vmem>>, vector<1x64x384xf32>
    %11 = vector.shape_cast %10 : vector<1x64x384xf32> to vector<64x384xf32>
    %cst_10 = arith.constant dense<0.000000e+00> : vector<8x384xf32>
    %12 = tpu.matmul %9, %11, %cst_10 {dimension_numbers = #tpu.dot_dimension_numbers<[1], [0], [0], [1], [0, 0, 1, 1], [], []>} : vector<8x64xf32>, vector<64x384xf32>, vector<8x384xf32> -> vector<8x384xf32>
    %13 = arith.addf %8, %12 : vector<8x384xf32>
    %14 = vector.extract_strided_slice %4 {offsets = [2, 0], sizes = [8, 64], strides = [1, 1]} : vector<16x64xf32> to vector<8x64xf32>
    %c2 = arith.constant 2 : index
    %c0_11 = arith.constant 0 : index
    %c0_12 = arith.constant 0 : index
    %15 = vector.load %arg4[%c2, %c0_11, %c0_12] : memref<3x64x384xf32, #tpu.memory_space<vmem>>, vector<1x64x384xf32>
    %16 = vector.shape_cast %15 : vector<1x64x384xf32> to vector<64x384xf32>
    %cst_13 = arith.constant dense<0.000000e+00> : vector<8x384xf32>
    %17 = tpu.matmul %14, %16, %cst_13 {dimension_numbers = #tpu.dot_dimension_numbers<[1], [0], [0], [1], [0, 0, 1, 1], [], []>} : vector<8x64xf32>, vector<64x384xf32>, vector<8x384xf32> -> vector<8x384xf32>
    %18 = arith.addf %13, %17 : vector<8x384xf32>
    %c0_14 = arith.constant 0 : index
    %c0_15 = arith.constant 0 : index
    %19 = vector.load %arg5[%c0_14, %c0_15] : memref<1x384xf32, #tpu.memory_space<vmem>>, vector<1x384xf32>
    %20 = vector.broadcast %19 : vector<1x384xf32> to vector<8x384xf32>
    %21 = arith.addf %18, %20 : vector<8x384xf32>
    %22 = vector.extract_strided_slice %21 {offsets = [0, 0], sizes = [8, 128], strides = [1, 1]} : vector<8x384xf32> to vector<8x128xf32>
    %23 = vector.extract_strided_slice %21 {offsets = [0, 128], sizes = [8, 128], strides = [1, 1]} : vector<8x384xf32> to vector<8x128xf32>
    %24 = arith.negf %23 : vector<8x128xf32>
    %25 = math.exp %24 : vector<8x128xf32>
    %cst_16 = arith.constant 1.000000e+00 : f32
    %26 = vector.broadcast %cst_16 : f32 to vector<8x128xf32>
    %27 = arith.addf %26, %25 : vector<8x128xf32>
    %28 = arith.divf %26, %27 : vector<8x128xf32>
    %29 = vector.extract_strided_slice %21 {offsets = [0, 256], sizes = [8, 128], strides = [1, 1]} : vector<8x384xf32> to vector<8x128xf32>
    %30 = arith.mulf %22, %28 : vector<8x128xf32>
    %31 = arith.addf %30, %29 : vector<8x128xf32>
    %cst_17 = arith.constant 0.000000e+00 : f32
    %32 = vector.broadcast %cst_17 : f32 to vector<8x128xf32>
    %33 = arith.maximumf %31, %32 : vector<8x128xf32>
    %c0_18 = arith.constant 0 : index
    %c0_19 = arith.constant 0 : index
    %c0_20 = arith.constant 0 : index
    %34 = vector.load %arg6[%c0_18, %c0_19, %c0_20] : memref<1x8x128xf32, #tpu.memory_space<vmem>>, vector<1x8x128xf32>
    %35 = vector.shape_cast %34 : vector<1x8x128xf32> to vector<8x128xf32>
    %36 = vector.shape_cast %33 : vector<8x128xf32> to vector<1x8x128xf32>
    tpu.vector_store %arg6[%c0_18, %c0_19, %c0_20], %36 {strides = array<i32>} : memref<1x8x128xf32, #tpu.memory_space<vmem>>, vector<1x8x128xf32>,
    return
  }
  func.func @transform_0(%arg0: i32, %arg1: i32) -> (i32, i32, i32) {
    %c0_i32 = arith.constant 0 : i32
    %c0_i32_0 = arith.constant 0 : i32
    return %arg0, %arg1, %c0_i32 : i32, i32, i32
  }
  func.func @transform_1(%arg0: i32, %arg1: i32) -> (i32, i32, i32) {
    %c1_i32 = arith.constant 1 : i32
    %0 = arith.addi %arg1, %c1_i32 : i32
    %c1_i32_0 = arith.constant 1 : i32
    %1 = arith.muli %0, %c1_i32_0 : i32
    %c0_i32 = arith.constant 0 : i32
    %c0_i32_1 = arith.constant 0 : i32
    return %arg0, %1, %c0_i32 : i32, i32, i32
  }
  func.func @transform_2(%arg0: i32, %arg1: i32) -> (i32, i32, i32) {
    %c0_i32 = arith.constant 0 : i32
    %c0_i32_0 = arith.constant 0 : i32
    %c0_i32_1 = arith.constant 0 : i32
    %c0_i32_2 = arith.constant 0 : i32
    return %c0_i32, %c0_i32_0, %c0_i32_1 : i32, i32, i32
  }
  func.func @transform_3(%arg0: i32, %arg1: i32) -> (i32, i32) {
    %c0_i32 = arith.constant 0 : i32
    %c0_i32_0 = arith.constant 0 : i32
    %c0_i32_1 = arith.constant 0 : i32
    return %c0_i32, %c0_i32_0 : i32, i32
  }
  func.func @transform_4(%arg0: i32, %arg1: i32) -> (i32, i32, i32) {
    %c0_i32 = arith.constant 0 : i32
    %c0_i32_0 = arith.constant 0 : i32
    return %arg0, %arg1, %c0_i32 : i32, i32, i32
  }
}

</mosaic_0001>

<llo_original>
// kernel: tpu_custom_call.1
$region0: #{tpu_custom_call.1}
  #allocation0 [shape = 'u32[]', space=smem, size = 0x4, offset = 0x4, fixed_abs, tag = 'smem constant byte address 0x4 - core index']
  #allocation1 [shape = 'u32[72,128]{1,0:T(1,128)}', space=vmem, size = 0x9000, scoped, tag = 'internal scratch']
  %s0 = inlined_call_operand.hbm [shape: f32[2,16,64], index: 0, kind: input, shape index: {}]
  %s1 = inlined_call_operand.hbm [shape: f32[2,16,64], index: 1, kind: input, shape index: {}]
  %s2 = inlined_call_operand.hbm [shape: f32[3,64,384], index: 2, kind: input, shape index: {}]
  %s3 = inlined_call_operand.hbm [shape: f32[1,384], index: 3, kind: input, shape index: {}]
  %s4 = inlined_call_operand.hbm [shape: f32[2,8,128], index: 4, kind: output, shape index: {}]
  %s5 = sld [smem:[#allocation0]]
  $region65: #{tpu_custom_call.1} parent=0
    _
  %s7 = ssub.s32 1, %s5
  %s8 = scalar_select 0, %s7, %s5
  $region1: #{tpu_custom_call.1} parent=0
    #allocation2 [shape = 'u8[8192]{0}', space=vmem, size = 0x2000, scoped, tag = 'input window, operand 0']
    #allocation3 [shape = 's32[2]{0}', space=sflag, size = 0x8, scoped, tag = 'scoped memory for tpu_custom_call.1']
    #allocation4 [shape = 's32[2]{0}', space=sflag, size = 0x8, scoped, tag = 'scoped memory for tpu_custom_call.1']
    #allocation5 [shape = 'u8[8192]{0}', space=vmem, size = 0x2000, scoped, tag = 'input window, operand 1']
    #allocation6 [shape = 's32[2]{0}', space=sflag, size = 0x8, scoped, tag = 'scoped memory for tpu_custom_call.1']
    #allocation7 [shape = 'u8[294912]{0}', space=vmem, size = 0x48000, scoped, tag = 'input window, operand 2, single buffered']
    #allocation8 [shape = 'u8[1536]{0}', space=vmem, size = 0x800, scoped, tag = 'input window, operand 3, single buffered']
    #allocation9 [shape = 's32[1]{0}', space=sflag, size = 0x4, scoped, tag = 'scoped memory for tpu_custom_call.1']
    #allocation10 [shape = 'u8[8192]{0}', space=vmem, size = 0x2000, scoped, tag = 'output window, operand 0']
    %9 = vsyncpa [#allocation3], 0
    %s10 = scalar_lea.sflag [#allocation3], 1
    %11 = vsyncpa %s10, 0
    %12 = vsyncpa [#allocation6], 0
    %s13 = scalar_lea.sflag [#allocation6], 1
    %14 = vsyncpa %s13, 0
    %15 = vsyncpa [#allocation9], 0
    %16 = vsyncpa [#allocation4], 0
    %s17 = scalar_lea.sflag [#allocation4], 1
    %18 = vsyncpa %s17, 0
    loop: start=0, step=1, limit=4
    $region2: #{tpu_custom_call.1} parent=1 // loop_pre_header
      _
    $region3: #{tpu_custom_call.1} parent=1 // loop_header
      %s20 = sphi 0, %s24
      %p21 = scmp.ge.s32.totalorder %s20, 4
      %s27 = sphi 0, %s39
      %s28 = sphi 0, %s35
      %s29 = sphi 0, %s27
      %s30 = sphi 0, %s28
      %s31 = sphi 0, %s29
      %s32 = sphi 0, %s30
      %s44 = sphi 0, %s46
      %s47 = sphi 0, %s44
      %s48 = sphi 0, %s47
      %s64 = sphi 0, %s48
      %s74 = sphi 0, %s76
      %s77 = sphi 0, %s74
      %s78 = sphi 0, %s77
      %s94 = sphi 0, %s78
      %s98 = sphi 0, %s98
      %s100 = sphi 0, %s98
      %s101 = sphi 0, %s100
      %s115 = sphi 0, %s101
      %s119 = sphi 0, %s119
      %s121 = sphi 0, %s119
      %s122 = sphi 0, %s121
      %s136 = sphi 0, %s122
      %s144 = sphi 0, %s146
      %s147 = sphi 0, %s144
      %s148 = sphi 0, %s147
      %s164 = sphi 0, %s148
    $region4: #{tpu_custom_call.1} parent=1 // loop_header_branch
      %23 = sbr.rel (%p21) target = $region8
    $region5: #{tpu_custom_call.1} parent=1 // loop_body
      %s25 = ssub.s32 %s20, 1
      %s26 = ssub.s32 %s20, 2
      %s33 = sadd.s32 1, %s28
      %p34 = scmp.ge.s32.totalorder %s33, 1
      %s35 = scalar_select %p34, 0, %s33
      %s36 = sadd.s32 1, %s27
      %s37 = scalar_select %p34, %s36, %s27
      %p38 = scmp.ge.s32.totalorder %s37, 2
      %s39 = scalar_select %p38, 0, %s37
      %s40 = ssub.s32 %s27, %s39
      %s41 = ssub.s32 %s28, %s35
      %s42 = sor.u32 %s40, %s41
      %p43 = scmp.eq.s32.totalorder %s42, 0
      %s45 = sadd.s32 %s44, 1
      %s46 = scalar_select %p43, %s44, %s45
      %p49 = pneg %p43
      %p50 = scmp.eq.s32.totalorder %s20, 1
      %p51 = por %p49, %p50
      %p52 = scmp.ne.s32.totalorder %s44, %s47
      %p53 = scmp.eq.s32.totalorder %s20, 0
      %p54 = por %p52, %p53
      %p55 = scmp.ne.s32.totalorder %s44, %s47
      %p56 = scmp.eq.s32.totalorder %s25, 1
      %p57 = por %p55, %p56
      %p58 = scmp.ne.s32.totalorder %s47, %s48
      %p59 = scmp.eq.s32.totalorder %s25, 0
      %p60 = por %p58, %p59
      %p61 = scmp.ne.s32.totalorder %s47, %s48
      %p62 = scmp.eq.s32.totalorder %s26, 1
      %p63 = por %p61, %p62
      %p65 = scmp.ne.s32.totalorder %s48, %s64
      %p66 = scmp.eq.s32.totalorder %s26, 0
      %p67 = por %p65, %p66
      %s68 = sadd.s32 %s28, 1
      %s69 = sadd.s32 %s35, 1
      %s70 = ssub.s32 %s27, %s39
      %s71 = ssub.s32 %s68, %s69
      %s72 = sor.u32 %s70, %s71
      %p73 = scmp.eq.s32.totalorder %s72, 0
      %s75 = sadd.s32 %s74, 1
      %s76 = scalar_select %p73, %s74, %s75
      %p79 = pneg %p73
      %p80 = scmp.eq.s32.totalorder %s20, 1
      %p81 = por %p79, %p80
      %p82 = scmp.ne.s32.totalorder %s74, %s77
      %p83 = scmp.eq.s32.totalorder %s20, 0
      %p84 = por %p82, %p83
      %p85 = scmp.ne.s32.totalorder %s74, %s77
      %p86 = scmp.eq.s32.totalorder %s25, 1
      %p87 = por %p85, %p86
      %p88 = scmp.ne.s32.totalorder %s77, %s78
      %p89 = scmp.eq.s32.totalorder %s25, 0
      %p90 = por %p88, %p89
      %p91 = scmp.ne.s32.totalorder %s77, %s78
      %p92 = scmp.eq.s32.totalorder %s26, 1
      %p93 = por %p91, %p92
      %p95 = scmp.ne.s32.totalorder %s78, %s94
      %p96 = scmp.eq.s32.totalorder %s26, 0
      %p97 = por %p95, %p96
      %s99 = sadd.s32 %s98, 1
      %p102 = scmp.eq.s32.totalorder %s20, 1
      %p103 = scmp.ne.s32.totalorder %s98, %s100
      %p104 = scmp.eq.s32.totalorder %s20, 0
      %p105 = por %p103, %p104
      %p106 = scmp.ne.s32.totalorder %s98, %s100
      %p107 = scmp.eq.s32.totalorder %s25, 1
      %p108 = por %p106, %p107
      %p109 = scmp.ne.s32.totalorder %s100, %s101
      %p110 = scmp.eq.s32.totalorder %s25, 0
      %p111 = por %p109, %p110
      %p112 = scmp.ne.s32.totalorder %s100, %s101
      %p113 = scmp.eq.s32.totalorder %s26, 1
      %p114 = por %p112, %p113
      %p116 = scmp.ne.s32.totalorder %s101, %s115
      %p117 = scmp.eq.s32.totalorder %s26, 0
      %p118 = por %p116, %p117
      %s120 = sadd.s32 %s119, 1
      %p123 = scmp.eq.s32.totalorder %s20, 1
      %p124 = scmp.ne.s32.totalorder %s119, %s121
      %p125 = scmp.eq.s32.totalorder %s20, 0
      %p126 = por %p124, %p125
      %p127 = scmp.ne.s32.totalorder %s119, %s121
      %p128 = scmp.eq.s32.totalorder %s25, 1
      %p129 = por %p127, %p128
      %p130 = scmp.ne.s32.totalorder %s121, %s122
      %p131 = scmp.eq.s32.totalorder %s25, 0
      %p132 = por %p130, %p131
      %p133 = scmp.ne.s32.totalorder %s121, %s122
      %p134 = scmp.eq.s32.totalorder %s26, 1
      %p135 = por %p133, %p134
      %p137 = scmp.ne.s32.totalorder %s122, %s136
      %p138 = scmp.eq.s32.totalorder %s26, 0
      %p139 = por %p137, %p138
      %s140 = ssub.s32 %s27, %s39
      %s141 = ssub.s32 %s28, %s35
      %s142 = sor.u32 %s140, %s141
      %p143 = scmp.eq.s32.totalorder %s142, 0
      %s145 = sadd.s32 %s144, 1
      %s146 = scalar_select %p143, %s144, %s145
      %p149 = pneg %p143
      %p150 = scmp.eq.s32.totalorder %s20, 1
      %p151 = por %p149, %p150
      %p152 = scmp.ne.s32.totalorder %s144, %s147
      %p153 = scmp.eq.s32.totalorder %s20, 0
      %p154 = por %p152, %p153
      %p155 = scmp.ne.s32.totalorder %s144, %s147
      %p156 = scmp.eq.s32.totalorder %s25, 1
      %p157 = por %p155, %p156
      %p158 = scmp.ne.s32.totalorder %s147, %s148
      %p159 = scmp.eq.s32.totalorder %s25, 0
      %p160 = por %p158, %p159
      %p161 = scmp.ne.s32.totalorder %s147, %s148
      %p162 = scmp.eq.s32.totalorder %s26, 1
      %p163 = por %p161, %p162
      %p165 = scmp.ne.s32.totalorder %s148, %s164
      %p166 = scmp.eq.s32.totalorder %s26, 0
      %p167 = por %p165, %p166
      %p168 = scmp.le.s32.totalorder 1, %s20
      %p169 = scmp.lt.s32.totalorder %s20, 3
      %p170 = pnand %p168, %p169
      %p171 = pneg %p170
      // Predicated region
      $region9: #{tpu_custom_call.1} parent=5 // pred_check
        _
      $region10: #{tpu_custom_call.1} parent=5 // pred_check_branch
        %173 = sbr.rel (%p170) target = $region12
      $region11: #{tpu_custom_call.1} parent=5 // pred_region
        %s174 = ssub.s32 %s20, 1
        // Predicated region
        $region13: #{tpu_custom_call.1} parent=11 // pred_check
          %p175 = pneg %p111
        $region14: #{tpu_custom_call.1} parent=11 // pred_check_branch
          %177 = sbr.rel (%p175) target = $region16
        $region15: #{tpu_custom_call.1} parent=11 // pred_region
          %179 = vsyncadd [#allocation6], 0
          %s180 = sshll.u32 %s2, 4
          %s181 = int_to_ptr.hbm [resolvable:$true] %s180
          %s182 = sshll.u32 [#allocation7], 4
          %s183 = int_to_ptr.vmem [resolvable:$true] %s182
          %188 = dma.hbm_to_vmem [thread:$0]  %s181, 9216, %s183, [#allocation6], 384, 384, 24
        $region16: #{tpu_custom_call.1} parent=11 // pred_fallthru
          _
        // Predicated region
        $region17: #{tpu_custom_call.1} parent=11 // pred_check
          %p189 = pneg %p132
        $region18: #{tpu_custom_call.1} parent=11 // pred_check_branch
          %191 = sbr.rel (%p189) target = $region20
        $region19: #{tpu_custom_call.1} parent=11 // pred_region
          %193 = vsyncadd [#allocation9], 0
          %s195 = sshll.u32 %s3, 4
          %s196 = int_to_ptr.hbm [resolvable:$true] %s195
          %s197 = sshll.u32 [#allocation8], 4
          %s198 = int_to_ptr.vmem [resolvable:$true] %s197
          %200 = dma.hbm_to_vmem [thread:$0]  %s196, 48, %s198, [#allocation9]
        $region20: #{tpu_custom_call.1} parent=11 // pred_fallthru
          _
      $region12: #{tpu_custom_call.1} parent=5 // pred_fallthru
        _
      %p201 = scmp.lt.s32.totalorder %s20, 2
      // Predicated region
      $region21: #{tpu_custom_call.1} parent=5 // pred_check
        %p202 = pneg %p201
      $region22: #{tpu_custom_call.1} parent=5 // pred_check_branch
        %204 = sbr.rel (%p202) target = $region24
      $region23: #{tpu_custom_call.1} parent=5 // pred_region
        // Predicated region
        $region25: #{tpu_custom_call.1} parent=23 // pred_check
          %p205 = pneg %p54
        $region26: #{tpu_custom_call.1} parent=23 // pred_check_branch
          %207 = sbr.rel (%p205) target = $region28
        $region27: #{tpu_custom_call.1} parent=23 // pred_region
          %s208 = sand.u32 %s44, 1
          %s209 = scalar_lea.sflag [#allocation3], %s208
          %s210 = sand.u32 %s44, 1
          %s211 = smul.addr %s210, 8
          %s212 = scalar_lea.vmem [#allocation2], %s211
          %214 = vsyncadd %s209, 0
          %s215 = smul.addr %s27, 2
          %s216 = sadd.s32 %s28, %s215
          %s217 = smul.addr %s216, 8
          %s218 = scalar_lea.hbm %s0, %s217
          %s220 = sshll.u32 %s218, 4
          %s221 = int_to_ptr.hbm [resolvable:$true] %s220
          %s222 = sshll.u32 %s212, 4
          %s223 = int_to_ptr.vmem [resolvable:$true] %s222
          %225 = dma.hbm_to_vmem [thread:$0]  %s221, 128, %s223, %s209
        $region28: #{tpu_custom_call.1} parent=23 // pred_fallthru
          _
        // Predicated region
        $region29: #{tpu_custom_call.1} parent=23 // pred_check
          %p226 = pneg %p84
        $region30: #{tpu_custom_call.1} parent=23 // pred_check_branch
          %228 = sbr.rel (%p226) target = $region32
        $region31: #{tpu_custom_call.1} parent=23 // pred_region
          %s229 = sand.u32 %s20, 1
          %s230 = scalar_lea.sflag [#allocation6], %s229
          %s231 = sand.u32 %s74, 1
          %s232 = smul.addr %s231, 8
          %s233 = scalar_lea.vmem [#allocation5], %s232
          %s234 = sadd.s32 %s28, 1
          %236 = vsyncadd %s230, 0
          %s237 = smul.addr %s27, 2
          %s238 = sadd.s32 %s234, %s237
          %s239 = smul.addr %s238, 8
          %s240 = scalar_lea.hbm %s1, %s239
          %s242 = sshll.u32 %s240, 4
          %s243 = int_to_ptr.hbm [resolvable:$true] %s242
          %s244 = sshll.u32 %s233, 4
          %s245 = int_to_ptr.vmem [resolvable:$true] %s244
          %247 = dma.hbm_to_vmem [thread:$0]  %s243, 128, %s245, %s230
        $region32: #{tpu_custom_call.1} parent=23 // pred_fallthru
          _
      $region24: #{tpu_custom_call.1} parent=5 // pred_fallthru
        _
      %p248 = scmp.le.s32.totalorder 1, %s20
      %p249 = scmp.lt.s32.totalorder %s20, 3
      %p250 = pnand %p248, %p249
      %p251 = pneg %p250
      // Predicated region
      $region33: #{tpu_custom_call.1} parent=5 // pred_check
        _
      $region34: #{tpu_custom_call.1} parent=5 // pred_check_branch
        %253 = sbr.rel (%p250) target = $region36
      $region35: #{tpu_custom_call.1} parent=5 // pred_region
        %s254 = ssub.s32 %s20, 1
        %s255 = sand.u32 %s47, 1
        %s256 = scalar_lea.sflag [#allocation3], %s255
        %s257 = sand.u32 %s47, 1
        %s258 = smul.addr %s257, 8
        %s259 = scalar_lea.vmem [#allocation2], %s258
        // Predicated region
        $region37: #{tpu_custom_call.1} parent=35 // pred_check
          %p260 = pneg %p60
        $region38: #{tpu_custom_call.1} parent=35 // pred_check_branch
          %262 = sbr.rel (%p260) target = $region40
        $region39: #{tpu_custom_call.1} parent=35 // pred_region
          %264 = dma.done %s256, 128
        $region40: #{tpu_custom_call.1} parent=35 // pred_fallthru
          _
        %s265 = sand.u32 %s25, 1
        %s266 = scalar_lea.sflag [#allocation6], %s265
        %s267 = sand.u32 %s77, 1
        %s268 = smul.addr %s267, 8
        %s269 = scalar_lea.vmem [#allocation5], %s268
        // Predicated region
        $region41: #{tpu_custom_call.1} parent=35 // pred_check
          %p270 = pneg %p90
        $region42: #{tpu_custom_call.1} parent=35 // pred_check_branch
          %272 = sbr.rel (%p270) target = $region44
        $region43: #{tpu_custom_call.1} parent=35 // pred_region
          %274 = dma.done %s266, 128
        $region44: #{tpu_custom_call.1} parent=35 // pred_fallthru
          _
        // Predicated region
        $region45: #{tpu_custom_call.1} parent=35 // pred_check
          %p275 = pneg %p111
        $region46: #{tpu_custom_call.1} parent=35 // pred_check_branch
          %277 = sbr.rel (%p275) target = $region48
        $region47: #{tpu_custom_call.1} parent=35 // pred_region
          %279 = dma.done [#allocation6], 9216
        $region48: #{tpu_custom_call.1} parent=35 // pred_fallthru
          _
        // Predicated region
        $region49: #{tpu_custom_call.1} parent=35 // pred_check
          %p280 = pneg %p132
        $region50: #{tpu_custom_call.1} parent=35 // pred_check_branch
          %282 = sbr.rel (%p280) target = $region52
        $region51: #{tpu_custom_call.1} parent=35 // pred_region
          %284 = dma.done [#allocation9], 48
        $region52: #{tpu_custom_call.1} parent=35 // pred_fallthru
          _
        %s285 = sand.u32 %s47, 1
        %s286 = scalar_lea.sflag [#allocation3], %s285
        %s287 = sand.u32 %s47, 1
        %s288 = smul.addr %s287, 8
        %s289 = scalar_lea.vmem [#allocation2], %s288
        %p290 = pneg %p60
        %p291 = pneg %p57
        %s292 = sand.u32 %s25, 1
        %s293 = scalar_lea.sflag [#allocation6], %s292
        %s294 = sand.u32 %s77, 1
        %s295 = smul.addr %s294, 8
        %s296 = scalar_lea.vmem [#allocation5], %s295
        %p297 = pneg %p90
        %p298 = pneg %p87
        %p299 = pneg %p111
        %p300 = pneg %p108
        %p301 = pneg %p132
        %p302 = pneg %p129
        %p303 = pneg %p160
        %p304 = pneg %p157
        %s305 = sand.u32 %s147, 1
        %s306 = scalar_lea.sflag [#allocation4], %s305
        %s307 = sand.u32 %s147, 1
        %s308 = smul.addr %s307, 8
        %s309 = scalar_lea.vmem [#allocation10], %s308
        %s310 = sadd.s32 %s30, 1
        %v311 = vld [vmem:[%s259] sm:$0xff]
        %v312 = vld [vmem:[%s269] sm:$0xff]
        %v313 = vld [vmem:[#allocation7] sm:$0xff]
        %v314 = vld [vmem:[#allocation7 + $0x8] sm:$0xff]
        %v315 = vld [vmem:[#allocation7 + $0x10] sm:$0xff]
        %v316 = vld [vmem:[#allocation7 + $0x18] sm:$0xff]
        %v317 = vld [vmem:[#allocation7 + $0x20] sm:$0xff]
        %v318 = vld [vmem:[#allocation7 + $0x28] sm:$0xff]
        %v319 = vld [vmem:[#allocation7 + $0x30] sm:$0xff]
        %v320 = vld [vmem:[#allocation7 + $0x38] sm:$0xff]
        %v321 = vld [vmem:[#allocation7 + $0x40] sm:$0xff]
        %v322 = vld [vmem:[#allocation7 + $0x48] sm:$0xff]
        %v323 = vld [vmem:[#allocation7 + $0x50] sm:$0xff]
        %v324 = vld [vmem:[#allocation7 + $0x58] sm:$0xff]
        %v325 = vld [vmem:[#allocation7 + $0x60] sm:$0xff]
        %v326 = vld [vmem:[#allocation7 + $0x68] sm:$0xff]
        %v327 = vld [vmem:[#allocation7 + $0x70] sm:$0xff]
        %v328 = vld [vmem:[#allocation7 + $0x78] sm:$0xff]
        %v329 = vld [vmem:[#allocation7 + $0x80] sm:$0xff]
        %v330 = vld [vmem:[#allocation7 + $0x88] sm:$0xff]
        %v331 = vld [vmem:[#allocation7 + $0x90] sm:$0xff]
        %v332 = vld [vmem:[#allocation7 + $0x98] sm:$0xff]
        %v333 = vld [vmem:[#allocation7 + $0xa0] sm:$0xff]
        %v334 = vld [vmem:[#allocation7 + $0xa8] sm:$0xff]
        %v335 = vld [vmem:[#allocation7 + $0xb0] sm:$0xff]
        %v336 = vld [vmem:[#allocation7 + $0xb8] sm:$0xff]
        %s337 = scalar_lea.vmem [#allocation7], 192
        %v338 = vld [vmem:[%s337] sm:$0xff]
        %v339 = vld [vmem:[%s337 + $0x8] sm:$0xff]
        %v340 = vld [vmem:[%s337 + $0x10] sm:$0xff]
        %v341 = vld [vmem:[%s337 + $0x18] sm:$0xff]
        %v342 = vld [vmem:[%s337 + $0x20] sm:$0xff]
        %v343 = vld [vmem:[%s337 + $0x28] sm:$0xff]
        %v344 = vld [vmem:[%s337 + $0x30] sm:$0xff]
        %v345 = vld [vmem:[%s337 + $0x38] sm:$0xff]
        %v346 = vld [vmem:[%s337 + $0x40] sm:$0xff]
        %v347 = vld [vmem:[%s337 + $0x48] sm:$0xff]
        %v348 = vld [vmem:[%s337 + $0x50] sm:$0xff]
        %v349 = vld [vmem:[%s337 + $0x58] sm:$0xff]
        %v350 = vld [vmem:[%s337 + $0x60] sm:$0xff]
        %v351 = vld [vmem:[%s337 + $0x68] sm:$0xff]
        %v352 = vld [vmem:[%s337 + $0x70] sm:$0xff]
        %v353 = vld [vmem:[%s337 + $0x78] sm:$0xff]
        %v354 = vld [vmem:[%s337 + $0x80] sm:$0xff]
        %v355 = vld [vmem:[%s337 + $0x88] sm:$0xff]
        %v356 = vld [vmem:[%s337 + $0x90] sm:$0xff]
        %v357 = vld [vmem:[%s337 + $0x98] sm:$0xff]
        %v358 = vld [vmem:[%s337 + $0xa0] sm:$0xff]
        %v359 = vld [vmem:[%s337 + $0xa8] sm:$0xff]
        %v360 = vld [vmem:[%s337 + $0xb0] sm:$0xff]
        %v361 = vld [vmem:[%s337 + $0xb8] sm:$0xff]
        %vm364 = vcmask 1046528
        %v365 = vrot.slane %v311, 1
        %v366 = vrot.slane %v312, 1
        %v367 = vsel %vm364, %v365, %v366
        %vm368 = vcmask 523264
        %v369 = vsel %vm368, %v367, 0
        %371 = vmatpush.msra.mxu0 0.0
        %372 = vmatpush.msra.mxu0 0.0
        %373 = vmatpush.msra.mxu0 0.0
        %374 = vmatpush.msra.mxu0 0.0
        %375 = vmatpush.msra.mxu0 0.0
        %376 = vmatpush.msra.mxu0 0.0
        %377 = vmatpush.msra.mxu0 0.0
        %378 = vmatpush.msra.mxu0 0.0
        %379 = vmatpush.msra.mxu0 %v359
        %380 = vmatpush.msra.mxu0 %v356
        %381 = vmatpush.msra.mxu0 %v353
        %382 = vmatpush.msra.mxu0 %v350
        %383 = vmatpush.msra.mxu0 %v347
        %384 = vmatpush.msra.mxu0 %v344
        %385 = vmatpush.msra.mxu0 %v341
        %386 = vmatpush.msra.mxu0 %v338
        %387 = vmatmul.f32.gmra.mxu0 %v369
        %v388 = vpop.f32.mrf.mxu0
        %v389 = vadd.f32 0.0, %v388
        %390 = vdwg.mxu0
        %391 = vmatpush.msra.mxu0 0.0
        %392 = vmatpush.msra.mxu0 0.0
        %393 = vmatpush.msra.mxu0 0.0
        %394 = vmatpush.msra.mxu0 0.0
        %395 = vmatpush.msra.mxu0 0.0
        %396 = vmatpush.msra.mxu0 0.0
        %397 = vmatpush.msra.mxu0 0.0
        %398 = vmatpush.msra.mxu0 0.0
        %399 = vmatpush.msra.mxu0 %v360
        %400 = vmatpush.msra.mxu0 %v357
        %401 = vmatpush.msra.mxu0 %v354
        %402 = vmatpush.msra.mxu0 %v351
        %403 = vmatpush.msra.mxu0 %v348
        %404 = vmatpush.msra.mxu0 %v345
        %405 = vmatpush.msra.mxu0 %v342
        %406 = vmatpush.msra.mxu0 %v339
        %407 = vmatmul.f32.gmra.mxu0 %v369
        %v408 = vpop.f32.mrf.mxu0
        %v409 = vadd.f32 0.0, %v408
        %410 = vdwg.mxu0
        %411 = vmatpush.msra.mxu0 0.0
        %412 = vmatpush.msra.mxu0 0.0
        %413 = vmatpush.msra.mxu0 0.0
        %414 = vmatpush.msra.mxu0 0.0
        %415 = vmatpush.msra.mxu0 0.0
        %416 = vmatpush.msra.mxu0 0.0
        %417 = vmatpush.msra.mxu0 0.0
        %418 = vmatpush.msra.mxu0 0.0
        %419 = vmatpush.msra.mxu0 %v361
        %420 = vmatpush.msra.mxu0 %v358
        %421 = vmatpush.msra.mxu0 %v355
        %422 = vmatpush.msra.mxu0 %v352
        %423 = vmatpush.msra.mxu0 %v349
        %424 = vmatpush.msra.mxu0 %v346
        %425 = vmatpush.msra.mxu0 %v343
        %426 = vmatpush.msra.mxu0 %v340
        %427 = vmatmul.f32.gmra.mxu0 %v369
        %v428 = vpop.f32.mrf.mxu0
        %v429 = vadd.f32 0.0, %v428
        %430 = vdwg.mxu0
        %v431 = vsel %vm368, %v311, 0
        %433 = vmatpush.msra.mxu0 0.0
        %434 = vmatpush.msra.mxu0 0.0
        %435 = vmatpush.msra.mxu0 0.0
        %436 = vmatpush.msra.mxu0 0.0
        %437 = vmatpush.msra.mxu0 0.0
        %438 = vmatpush.msra.mxu0 0.0
        %439 = vmatpush.msra.mxu0 0.0
        %440 = vmatpush.msra.mxu0 0.0
        %441 = vmatpush.msra.mxu0 %v334
        %442 = vmatpush.msra.mxu0 %v331
        %443 = vmatpush.msra.mxu0 %v328
        %444 = vmatpush.msra.mxu0 %v325
        %445 = vmatpush.msra.mxu0 %v322
        %446 = vmatpush.msra.mxu0 %v319
        %447 = vmatpush.msra.mxu0 %v316
        %448 = vmatpush.msra.mxu0 %v313
        %449 = vmatmul.f32.gmra.mxu0 %v431
        %v450 = vpop.f32.mrf.mxu0
        %v451 = vadd.f32 %v389, %v450
        %452 = vdwg.mxu0
        %453 = vmatpush.msra.mxu0 0.0
        %454 = vmatpush.msra.mxu0 0.0
        %455 = vmatpush.msra.mxu0 0.0
        %456 = vmatpush.msra.mxu0 0.0
        %457 = vmatpush.msra.mxu0 0.0
        %458 = vmatpush.msra.mxu0 0.0
        %459 = vmatpush.msra.mxu0 0.0
        %460 = vmatpush.msra.mxu0 0.0
        %461 = vmatpush.msra.mxu0 %v335
        %462 = vmatpush.msra.mxu0 %v332
        %463 = vmatpush.msra.mxu0 %v329
        %464 = vmatpush.msra.mxu0 %v326
        %465 = vmatpush.msra.mxu0 %v323
        %466 = vmatpush.msra.mxu0 %v320
        %467 = vmatpush.msra.mxu0 %v317
        %468 = vmatpush.msra.mxu0 %v314
        %469 = vmatmul.f32.gmra.mxu0 %v431
        %v470 = vpop.f32.mrf.mxu0
        %v471 = vadd.f32 %v409, %v470
        %472 = vdwg.mxu0
        %473 = vmatpush.msra.mxu0 0.0
        %474 = vmatpush.msra.mxu0 0.0
        %475 = vmatpush.msra.mxu0 0.0
        %476 = vmatpush.msra.mxu0 0.0
        %477 = vmatpush.msra.mxu0 0.0
        %478 = vmatpush.msra.mxu0 0.0
        %479 = vmatpush.msra.mxu0 0.0
        %480 = vmatpush.msra.mxu0 0.0
        %481 = vmatpush.msra.mxu0 %v336
        %482 = vmatpush.msra.mxu0 %v333
        %483 = vmatpush.msra.mxu0 %v330
        %484 = vmatpush.msra.mxu0 %v327
        %485 = vmatpush.msra.mxu0 %v324
        %486 = vmatpush.msra.mxu0 %v321
        %487 = vmatpush.msra.mxu0 %v318
        %488 = vmatpush.msra.mxu0 %v315
        %489 = vmatmul.f32.gmra.mxu0 %v431
        %v490 = vpop.f32.mrf.mxu0
        %v491 = vadd.f32 %v429, %v490
        %492 = vdwg.mxu0
        %s493 = scalar_lea.vmem [#allocation7], 384
        %v494 = vld [vmem:[%s493] sm:$0xff]
        %v495 = vld [vmem:[%s493 + $0x8] sm:$0xff]
        %v496 = vld [vmem:[%s493 + $0x10] sm:$0xff]
        %v497 = vld [vmem:[%s493 + $0x18] sm:$0xff]
        %v498 = vld [vmem:[%s493 + $0x20] sm:$0xff]
        %v499 = vld [vmem:[%s493 + $0x28] sm:$0xff]
        %v500 = vld [vmem:[%s493 + $0x30] sm:$0xff]
        %v501 = vld [vmem:[%s493 + $0x38] sm:$0xff]
        %v502 = vld [vmem:[%s493 + $0x40] sm:$0xff]
        %v503 = vld [vmem:[%s493 + $0x48] sm:$0xff]
        %v504 = vld [vmem:[%s493 + $0x50] sm:$0xff]
        %v505 = vld [vmem:[%s493 + $0x58] sm:$0xff]
        %v506 = vld [vmem:[%s493 + $0x60] sm:$0xff]
        %v507 = vld [vmem:[%s493 + $0x68] sm:$0xff]
        %v508 = vld [vmem:[%s493 + $0x70] sm:$0xff]
        %v509 = vld [vmem:[%s493 + $0x78] sm:$0xff]
        %v510 = vld [vmem:[%s493 + $0x80] sm:$0xff]
        %v511 = vld [vmem:[%s493 + $0x88] sm:$0xff]
        %v512 = vld [vmem:[%s493 + $0x90] sm:$0xff]
        %v513 = vld [vmem:[%s493 + $0x98] sm:$0xff]
        %v514 = vld [vmem:[%s493 + $0xa0] sm:$0xff]
        %v515 = vld [vmem:[%s493 + $0xa8] sm:$0xff]
        %v516 = vld [vmem:[%s493 + $0xb0] sm:$0xff]
        %v517 = vld [vmem:[%s493 + $0xb8] sm:$0xff]
        %vm518 = vcmask 1045504
        %v519 = vrot.slane %v311, 2
        %v520 = vrot.slane %v312, 2
        %v521 = vsel %vm518, %v519, %v520
        %v522 = vsel %vm368, %v521, 0
        %524 = vmatpush.msra.mxu0 0.0
        %525 = vmatpush.msra.mxu0 0.0
        %526 = vmatpush.msra.mxu0 0.0
        %527 = vmatpush.msra.mxu0 0.0
        %528 = vmatpush.msra.mxu0 0.0
        %529 = vmatpush.msra.mxu0 0.0
        %530 = vmatpush.msra.mxu0 0.0
        %531 = vmatpush.msra.mxu0 0.0
        %532 = vmatpush.msra.mxu0 %v515
        %533 = vmatpush.msra.mxu0 %v512
        %534 = vmatpush.msra.mxu0 %v509
        %535 = vmatpush.msra.mxu0 %v506
        %536 = vmatpush.msra.mxu0 %v503
        %537 = vmatpush.msra.mxu0 %v500
        %538 = vmatpush.msra.mxu0 %v497
        %539 = vmatpush.msra.mxu0 %v494
        %540 = vmatmul.f32.gmra.mxu0 %v522
        %v541 = vpop.f32.mrf.mxu0
        %v542 = vadd.f32 0.0, %v541
        %543 = vdwg.mxu0
        %544 = vmatpush.msra.mxu0 0.0
        %545 = vmatpush.msra.mxu0 0.0
        %546 = vmatpush.msra.mxu0 0.0
        %547 = vmatpush.msra.mxu0 0.0
        %548 = vmatpush.msra.mxu0 0.0
        %549 = vmatpush.msra.mxu0 0.0
        %550 = vmatpush.msra.mxu0 0.0
        %551 = vmatpush.msra.mxu0 0.0
        %552 = vmatpush.msra.mxu0 %v516
        %553 = vmatpush.msra.mxu0 %v513
        %554 = vmatpush.msra.mxu0 %v510
        %555 = vmatpush.msra.mxu0 %v507
        %556 = vmatpush.msra.mxu0 %v504
        %557 = vmatpush.msra.mxu0 %v501
        %558 = vmatpush.msra.mxu0 %v498
        %559 = vmatpush.msra.mxu0 %v495
        %560 = vmatmul.f32.gmra.mxu0 %v522
        %v561 = vpop.f32.mrf.mxu0
        %v562 = vadd.f32 0.0, %v561
        %563 = vdwg.mxu0
        %564 = vmatpush.msra.mxu0 0.0
        %565 = vmatpush.msra.mxu0 0.0
        %566 = vmatpush.msra.mxu0 0.0
        %567 = vmatpush.msra.mxu0 0.0
        %568 = vmatpush.msra.mxu0 0.0
        %569 = vmatpush.msra.mxu0 0.0
        %570 = vmatpush.msra.mxu0 0.0
        %571 = vmatpush.msra.mxu0 0.0
        %572 = vmatpush.msra.mxu0 %v517
        %573 = vmatpush.msra.mxu0 %v514
        %574 = vmatpush.msra.mxu0 %v511
        %575 = vmatpush.msra.mxu0 %v508
        %576 = vmatpush.msra.mxu0 %v505
        %577 = vmatpush.msra.mxu0 %v502
        %578 = vmatpush.msra.mxu0 %v499
        %579 = vmatpush.msra.mxu0 %v496
        %580 = vmatmul.f32.gmra.mxu0 %v522
        %v581 = vpop.f32.mrf.mxu0
        %v582 = vadd.f32 0.0, %v581
        %583 = vdwg.mxu0
        %v584 = vadd.f32 %v451, %v542
        %v585 = vadd.f32 %v471, %v562
        %v586 = vadd.f32 %v491, %v582
        %v587 = vld [vmem:[#allocation8] sm:$0x7]
        %v589 = vperm.slane %v587, 0
        %v590 = vperm.slane %v587, 1
        %v591 = vperm.slane %v587, 2
        %v595 = vadd.f32 %v584, %v589
        %v596 = vadd.f32 %v585, %v590
        %v597 = vadd.f32 %v586, %v591
        %v598 = vxor.u32 %v596, 2147483648
        %v599 = vmul.f32 %v598, 1.442695
        %v600 = vpow.pop %v599
        %v601 = vadd.f32 %v600, 1.0
        %v602 = vrcp.pop %v601
        %v603 = vmul.f32 %v601, %v602
        %v604 = vsub.f32 1.0, %v603
        %v605 = vmul.f32 %v602, %v604
        %v606 = vadd.f32 %v602, %v605
        %vm607 = vweird.f32 %v601
        %vm608 = vweird.f32 %v602
        %vm609 = vmor %vm607, %vm608
        %v610 = vsel %vm609, %v602, %v606
        %v611 = vand.u32 2147483647, %v601
        %vm612 = vcmp.eq.f32.partialorder %v611, 8.507059e+37
        %v613 = vand.u32 %v601, 2147483648
        %v614 = vor.u32 1.1754944e-38, %v613
        %v615 = vsel %vm612, %v614, %v610
        %v616 = vmul.f32 1.0, %v615
        %v617 = vmul.f32 %v595, %v616
        %v618 = vadd.f32 %v617, %v597
        %v619 = vmax.f32 %v618, 0.0
        %620 = vst [vmem:[%s309] sm:$0xff] %v619
        %s621 = sand.u32 %s147, 1
        %s622 = scalar_lea.sflag [#allocation4], %s621
        %s623 = sand.u32 %s147, 1
        %s624 = smul.addr %s623, 8
        %s625 = scalar_lea.vmem [#allocation10], %s624
        // Predicated region
        $region53: #{tpu_custom_call.1} parent=35 // pred_check
          %p626 = pneg %p157
        $region54: #{tpu_custom_call.1} parent=35 // pred_check_branch
          %628 = sbr.rel (%p626) target = $region56
        $region55: #{tpu_custom_call.1} parent=35 // pred_region
          %630 = vsyncadd %s622, 0
          %s631 = sadd.s32 %s30, %s29
          %s632 = smul.addr %s631, 8
          %s633 = scalar_lea.hbm %s4, %s632
          %s635 = sshll.u32 %s625, 4
          %s636 = int_to_ptr.vmem [resolvable:$true] %s635
          %s637 = sshll.u32 %s633, 4
          %s638 = int_to_ptr.hbm [resolvable:$true] %s637
          %640 = dma.vmem_to_hbm [thread:$0]  %s636, 128, %s638, %s622
        $region56: #{tpu_custom_call.1} parent=35 // pred_fallthru
          _
      $region36: #{tpu_custom_call.1} parent=5 // pred_fallthru
        _
      %p641 = scmp.le.s32.totalorder 2, %s20
      // Predicated region
      $region57: #{tpu_custom_call.1} parent=5 // pred_check
        %p642 = pneg %p641
      $region58: #{tpu_custom_call.1} parent=5 // pred_check_branch
        %644 = sbr.rel (%p642) target = $region60
      $region59: #{tpu_custom_call.1} parent=5 // pred_region
        %s645 = ssub.s32 %s20, 2
        // Predicated region
        $region61: #{tpu_custom_call.1} parent=59 // pred_check
          %p646 = pneg %p163
        $region62: #{tpu_custom_call.1} parent=59 // pred_check_branch
          %648 = sbr.rel (%p646) target = $region64
        $region63: #{tpu_custom_call.1} parent=59 // pred_region
          %s649 = sand.u32 %s148, 1
          %s650 = scalar_lea.sflag [#allocation4], %s649
          %s651 = sand.u32 %s148, 1
          %s652 = smul.addr %s651, 8
          %s653 = scalar_lea.vmem [#allocation10], %s652
          %655 = dma.done %s650, 128
        $region64: #{tpu_custom_call.1} parent=59 // pred_fallthru
          _
      $region60: #{tpu_custom_call.1} parent=5 // pred_fallthru
        _
    $region6: #{tpu_custom_call.1} parent=1 // loop_footer
      %s24 = sadd.s32 1, %s20
    $region7: #{tpu_custom_call.1} parent=1 // loop_footer_branch
      %19 = sbr.rel target = $region3
    $region8: #{tpu_custom_call.1} parent=1 // loop_exit
      _
    %656 = vsyncpa [#allocation3], 1
    %s657 = scalar_lea.sflag [#allocation3], 1
    %658 = vsyncpa %s657, 1
    %659 = vsyncpa [#allocation6], 1
    %s660 = scalar_lea.sflag [#allocation6], 1
    %661 = vsyncpa %s660, 1
    %662 = vsyncpa [#allocation9], 1
    %663 = vsyncpa [#allocation4], 1
    %s664 = scalar_lea.sflag [#allocation4], 1
    %665 = vsyncpa %s664, 1

</llo_original>
